<compile_context>
chip_gen: v7x
topology: tpu7x:2x2x1
jax: 0.10.0
libtpu: 0.0.40
codegen_flags: <defaults>
</compile_context>

<pallas_src>
import functools

import jax
import jax.numpy as jnp
from jax.experimental import pallas as pl
from jax.experimental.pallas import tpu as pltpu


def _round_up(x, m):
    return ((x + m - 1) // m) * m


# ----------------------------------------------------------------------------
# Kernel: one row tile (TM rows) of the encoder forward pass.
# ----------------------------------------------------------------------------
def encoder_kernel(x_ref, eps_ref,
                   w1_ref, b1_ref, w2_ref, b2_ref, wh_ref, bh_ref,
                   mu_ref, logvar_ref, z_ref, *, latent_dim):
    # x tile: (TM, Din) bf16. Weights bf16 (VMEM-resident via constant
    # index_map), biases f32. Matmuls accumulate in f32 on the MXU; all
    # elementwise math (ReLU, exp, reparam) stays in f32 (v5e-safe).
    x = x_ref[...]

    h = jnp.dot(x, w1_ref[...], preferred_element_type=jnp.float32) + b1_ref[...]
    h = jnp.maximum(h, 0.0)
    # Dropout(0.1) is identity in eval mode.
    # TODO(synk): training-mode dropout (RNG mask) not implemented in this kernel.

    h2 = jnp.dot(h.astype(jnp.bfloat16), w2_ref[...],
                 preferred_element_type=jnp.float32) + b2_ref[...]
    h2 = jnp.maximum(h2, 0.0)

    # Fused mu|logvar head: one matmul; lanes [0:L] = mu, [L:2L] = logvar.
    head = jnp.dot(h2.astype(jnp.bfloat16), wh_ref[...],
                   preferred_element_type=jnp.float32) + bh_ref[...]
    mu = head[:, :latent_dim]
    logvar = head[:, latent_dim:2 * latent_dim]

    std = jnp.exp(0.5 * logvar)                 # EUP transcendental, f32
    z = mu + eps_ref[...] * std

    mu_ref[...] = mu
    logvar_ref[...] = logvar
    z_ref[...] = z


# ----------------------------------------------------------------------------
# One-time parameter preparation: pad/cast weights, fuse the two head layers.
# (Call once and reuse -- keeps the per-call path free of weight HBM passes.)
# ----------------------------------------------------------------------------
def prepare_params(params):
    Din, H = params["w1"].shape
    L = params["wmu"].shape[1]
    Hp = _round_up(H, 128)
    Wh = _round_up(2 * L, 128)

    bf16 = jnp.bfloat16

    w1 = jnp.zeros((Din, Hp), bf16).at[:, :H].set(params["w1"].astype(bf16))
    b1 = jnp.zeros((1, Hp), jnp.float32).at[:, :H].set(
        params["b1"].reshape(1, -1).astype(jnp.float32))
    w2 = jnp.zeros((Hp, Hp), bf16).at[:H, :H].set(params["w2"].astype(bf16))
    b2 = jnp.zeros((1, Hp), jnp.float32).at[:, :H].set(
        params["b2"].reshape(1, -1).astype(jnp.float32))

    wh = jnp.zeros((Hp, Wh), bf16)
    wh = wh.at[:H, :L].set(params["wmu"].astype(bf16))
    wh = wh.at[:H, L:2 * L].set(params["wlv"].astype(bf16))
    bh = jnp.zeros((1, Wh), jnp.float32)
    bh = bh.at[:, :L].set(params["bmu"].reshape(1, -1).astype(jnp.float32))
    bh = bh.at[:, L:2 * L].set(params["blv"].reshape(1, -1).astype(jnp.float32))

    return dict(w1=w1, b1=b1, w2=w2, b2=b2, wh=wh, bh=bh)


# ----------------------------------------------------------------------------
# Forward wrapper: row-tiled grid over N = B*S.
# ----------------------------------------------------------------------------
def variational_encoder_forward(x, eps, prepped, *, block_rows=1024):
    B, S, Din = x.shape
    L = eps.shape[-1]
    Hp = prepped["w1"].shape[1]
    Wh = prepped["wh"].shape[1]
    N = B * S

    # Row tile: multiple of 128 so every matmul LHS is a full [128, *] tile.
    block_rows = max(128, _round_up(block_rows, 128))
    TM = min(block_rows, _round_up(N, 128))
    Np = _round_up(N, TM)
    grid = (Np // TM,)

    # Single fused cast (+ row pad when needed); last dims stay unpadded.
    x_flat = x.reshape(N, Din).astype(jnp.bfloat16)
    eps_flat = eps.reshape(N, L).astype(jnp.float32)
    if Np != N:
        x_flat = jnp.pad(x_flat, ((0, Np - N), (0, 0)))
        eps_flat = jnp.pad(eps_flat, ((0, Np - N), (0, 0)))

    def row_spec(width):
        return pl.BlockSpec((TM, width), lambda i: (i, 0))

    def const_spec(shape):
        # Constant block index -> stays VMEM-resident across grid steps.
        return pl.BlockSpec(shape, lambda i: (0, 0))

    kernel = functools.partial(encoder_kernel, latent_dim=L)

    mu_p, logvar_p, z_p = pl.pallas_call(
        kernel,
        grid=grid,
        in_specs=[
            row_spec(Din),                                # x tile
            row_spec(L),                                  # eps tile
            const_spec((Din, Hp)), const_spec((1, Hp)),   # w1, b1
            const_spec((Hp, Hp)),  const_spec((1, Hp)),   # w2, b2
            const_spec((Hp, Wh)),  const_spec((1, Wh)),   # fused head w, b
        ],
        out_specs=(row_spec(L), row_spec(L), row_spec(L)),
        out_shape=(
            jax.ShapeDtypeStruct((Np, L), jnp.float32),   # mu
            jax.ShapeDtypeStruct((Np, L), jnp.float32),   # logvar
            jax.ShapeDtypeStruct((Np, L), jnp.float32),   # z
        ),
        compiler_params=pltpu.CompilerParams(
            dimension_semantics=("parallel",),
            vmem_limit_bytes=32 * 1024 * 1024,            # safe on v5e/v6e/v7x
        ),
    )(x_flat, eps_flat,
      prepped["w1"], prepped["b1"], prepped["w2"], prepped["b2"],
      prepped["wh"], prepped["bh"])

    mu = mu_p[:N].reshape(B, S, L)
    logvar = logvar_p[:N].reshape(B, S, L)
    z = z_p[:N].reshape(B, S, L)
    return mu, logvar, z


# ----------------------------------------------------------------------------
# Pure-JAX reference (same math, f32) for a correctness check.
# ----------------------------------------------------------------------------
def variational_encoder_ref(x, eps, params):
    B, S, Din = x.shape
    L = params["wmu"].shape[1]
    xf = x.reshape(-1, Din).astype(jnp.float32)
    h = jnp.maximum(xf @ params["w1"] + params["b1"], 0.0)
    h = jnp.maximum(h @ params["w2"] + params["b2"], 0.0)
    mu = h @ params["wmu"] + params["bmu"]
    logvar = h @ params["wlv"] + params["blv"]
    z = mu + eps.reshape(-1, L) * jnp.exp(0.5 * logvar)
    return (mu.reshape(B, S, L), logvar.reshape(B, S, L), z.reshape(B, S, L))


# ----------------------------------------------------------------------------
# Deterministic parameter init (mirrors torch.nn.Linear default init).
# ----------------------------------------------------------------------------
def init_params(key, input_dim, hidden_dim, latent_dim):
    ks = jax.random.split(key, 4)

    def lin(k, din, dout):
        bound = 1.0 / jnp.sqrt(din)
        kw, kb = jax.random.split(k)
        w = jax.random.uniform(kw, (din, dout), jnp.float32, -bound, bound)
        b = jax.random.uniform(kb, (1, dout), jnp.float32, -bound, bound)
        return w, b

    p = {}
    p["w1"], p["b1"] = lin(ks[0], input_dim, hidden_dim)
    p["w2"], p["b2"] = lin(ks[1], hidden_dim, hidden_dim)
    p["wmu"], p["bmu"] = lin(ks[2], hidden_dim, latent_dim)
    p["wlv"], p["blv"] = lin(ks[3], hidden_dim, latent_dim)
    return p


if __name__ == "__main__":
    B, S = 2, 8
    input_dim, hidden_dim, latent_dim = 16, 32, 16

    key = jax.random.PRNGKey(0)
    k_x, k_eps, k_p = jax.random.split(key, 3)

    x = jax.random.normal(k_x, (B, S, input_dim), jnp.float32)
    # torch's forward draws eps = randn_like(std) internally; here eps is an
    # explicit deterministic input with the same shape/role.
    eps = jax.random.normal(k_eps, (B, S, latent_dim), jnp.float32)
    params = init_params(k_p, input_dim, hidden_dim, latent_dim)

    prepped = prepare_params(params)          # one-time pad/cast/head-fusion
    fwd = jax.jit(variational_encoder_forward)

    mu, logvar, z = fwd(x, eps, prepped)
    jax.block_until_ready(z)

    assert mu.shape == (B, S, latent_dim)
    assert logvar.shape == (B, S, latent_dim)
    assert z.shape == (B, S, latent_dim)
    assert jnp.isfinite(mu).all() and jnp.isfinite(logvar).all() and jnp.isfinite(z).all()

    # bf16 matmul operands -> loose tolerance vs f32 reference.
    mu_r, logvar_r, z_r = variational_encoder_ref(x, eps, params)
    assert jnp.allclose(mu, mu_r, atol=5e-2, rtol=5e-2)
    assert jnp.allclose(logvar, logvar_r, atol=5e-2, rtol=5e-2)
    assert jnp.allclose(z, z_r, atol=5e-2, rtol=5e-2)

    print("KERNEL_OK")
</pallas_src>

<mosaic_0001>
module attributes {stable_mosaic.version = 11 : i64} {
  func.func @encoder_kernel(%arg0: i32, %arg1: memref<128x16xbf16, #tpu.memory_space<vmem>>, %arg2: memref<128x16xf32, #tpu.memory_space<vmem>>, %arg3: memref<16x128xbf16, #tpu.memory_space<vmem>>, %arg4: memref<1x128xf32, #tpu.memory_space<vmem>>, %arg5: memref<128x128xbf16, #tpu.memory_space<vmem>>, %arg6: memref<1x128xf32, #tpu.memory_space<vmem>>, %arg7: memref<128x128xbf16, #tpu.memory_space<vmem>>, %arg8: memref<1x128xf32, #tpu.memory_space<vmem>>, %arg9: memref<128x16xf32, #tpu.memory_space<vmem>>, %arg10: memref<128x16xf32, #tpu.memory_space<vmem>>, %arg11: memref<128x16xf32, #tpu.memory_space<vmem>>) attributes {dimension_semantics = [#tpu.dimension_semantics<parallel>], iteration_bounds = array<i64: 1>, scalar_prefetch = 0 : i64, scratch_operands = 0 : i64, tpu.core_type = #tpu.core_type<tc>, window_params = [{transform_indices = @transform_0, window_bounds = array<i64: 128, 16>}, {transform_indices = @transform_1, window_bounds = array<i64: 128, 16>}, {pipeline_mode = #tpu.pipeline_mode<synchronous>, transform_indices = @transform_2, window_bounds = array<i64: 16, 128>}, {pipeline_mode = #tpu.pipeline_mode<synchronous>, transform_indices = @transform_3, window_bounds = array<i64: 1, 128>}, {pipeline_mode = #tpu.pipeline_mode<synchronous>, transform_indices = @transform_4, window_bounds = array<i64: 128, 128>}, {pipeline_mode = #tpu.pipeline_mode<synchronous>, transform_indices = @transform_5, window_bounds = array<i64: 1, 128>}, {pipeline_mode = #tpu.pipeline_mode<synchronous>, transform_indices = @transform_6, window_bounds = array<i64: 128, 128>}, {pipeline_mode = #tpu.pipeline_mode<synchronous>, transform_indices = @transform_7, window_bounds = array<i64: 1, 128>}, {transform_indices = @transform_8, window_bounds = array<i64: 128, 16>}, {transform_indices = @transform_9, window_bounds = array<i64: 128, 16>}, {transform_indices = @transform_10, window_bounds = array<i64: 128, 16>}]} {
    %c0 = arith.constant 0 : index
    %c0_0 = arith.constant 0 : index
    %0 = vector.load %arg1[%c0, %c0_0] : memref<128x16xbf16, #tpu.memory_space<vmem>>, vector<128x16xbf16>
    %c0_1 = arith.constant 0 : index
    %c0_2 = arith.constant 0 : index
    %1 = vector.load %arg3[%c0_1, %c0_2] : memref<16x128xbf16, #tpu.memory_space<vmem>>, vector<16x128xbf16>
    %cst = arith.constant dense<0.000000e+00> : vector<128x128xf32>
    %2 = tpu.matmul %0, %1, %cst {dimension_numbers = #tpu.dot_dimension_numbers<[1], [0], [0], [1], [0, 0, 1, 1], [], []>} : vector<128x16xbf16>, vector<16x128xbf16>, vector<128x128xf32> -> vector<128x128xf32>
    %c0_3 = arith.constant 0 : index
    %c0_4 = arith.constant 0 : index
    %3 = vector.load %arg4[%c0_3, %c0_4] : memref<1x128xf32, #tpu.memory_space<vmem>>, vector<1x128xf32>
    %4 = vector.broadcast %3 : vector<1x128xf32> to vector<128x128xf32>
    %5 = arith.addf %2, %4 : vector<128x128xf32>
    %cst_5 = arith.constant 0.000000e+00 : f32
    %6 = vector.broadcast %cst_5 : f32 to vector<128x128xf32>
    %7 = arith.maximumf %5, %6 : vector<128x128xf32>
    %8 = arith.truncf %7 : vector<128x128xf32> to vector<128x128xbf16>
    %c0_6 = arith.constant 0 : index
    %c0_7 = arith.constant 0 : index
    %9 = vector.load %arg5[%c0_6, %c0_7] : memref<128x128xbf16, #tpu.memory_space<vmem>>, vector<128x128xbf16>
    %cst_8 = arith.constant dense<0.000000e+00> : vector<128x128xf32>
    %10 = tpu.matmul %8, %9, %cst_8 {dimension_numbers = #tpu.dot_dimension_numbers<[1], [0], [0], [1], [0, 0, 1, 1], [], []>} : vector<128x128xbf16>, vector<128x128xbf16>, vector<128x128xf32> -> vector<128x128xf32>
    %c0_9 = arith.constant 0 : index
    %c0_10 = arith.constant 0 : index
    %11 = vector.load %arg6[%c0_9, %c0_10] : memref<1x128xf32, #tpu.memory_space<vmem>>, vector<1x128xf32>
    %12 = vector.broadcast %11 : vector<1x128xf32> to vector<128x128xf32>
    %13 = arith.addf %10, %12 : vector<128x128xf32>
    %cst_11 = arith.constant 0.000000e+00 : f32
    %14 = vector.broadcast %cst_11 : f32 to vector<128x128xf32>
    %15 = arith.maximumf %13, %14 : vector<128x128xf32>
    %16 = arith.truncf %15 : vector<128x128xf32> to vector<128x128xbf16>
    %c0_12 = arith.constant 0 : index
    %c0_13 = arith.constant 0 : index
    %17 = vector.load %arg7[%c0_12, %c0_13] : memref<128x128xbf16, #tpu.memory_space<vmem>>, vector<128x128xbf16>
    %cst_14 = arith.constant dense<0.000000e+00> : vector<128x128xf32>
    %18 = tpu.matmul %16, %17, %cst_14 {dimension_numbers = #tpu.dot_dimension_numbers<[1], [0], [0], [1], [0, 0, 1, 1], [], []>} : vector<128x128xbf16>, vector<128x128xbf16>, vector<128x128xf32> -> vector<128x128xf32>
    %c0_15 = arith.constant 0 : index
    %c0_16 = arith.constant 0 : index
    %19 = vector.load %arg8[%c0_15, %c0_16] : memref<1x128xf32, #tpu.memory_space<vmem>>, vector<1x128xf32>
    %20 = vector.broadcast %19 : vector<1x128xf32> to vector<128x128xf32>
    %21 = arith.addf %18, %20 : vector<128x128xf32>
    %22 = vector.extract_strided_slice %21 {offsets = [0, 0], sizes = [128, 16], strides = [1, 1]} : vector<128x128xf32> to vector<128x16xf32>
    %23 = vector.extract_strided_slice %21 {offsets = [0, 16], sizes = [128, 16], strides = [1, 1]} : vector<128x128xf32> to vector<128x16xf32>
    %cst_17 = arith.constant 5.000000e-01 : f32
    %24 = vector.broadcast %cst_17 : f32 to vector<128x16xf32>
    %25 = arith.mulf %24, %23 : vector<128x16xf32>
    %26 = math.exp %25 : vector<128x16xf32>
    %c0_18 = arith.constant 0 : index
    %c0_19 = arith.constant 0 : index
    %27 = vector.load %arg2[%c0_18, %c0_19] : memref<128x16xf32, #tpu.memory_space<vmem>>, vector<128x16xf32>
    %28 = arith.mulf %27, %26 : vector<128x16xf32>
    %29 = arith.addf %22, %28 : vector<128x16xf32>
    %c0_20 = arith.constant 0 : index
    %c0_21 = arith.constant 0 : index
    %30 = vector.load %arg9[%c0_20, %c0_21] : memref<128x16xf32, #tpu.memory_space<vmem>>, vector<128x16xf32>
    tpu.vector_store %arg9[%c0_20, %c0_21], %22 {strides = array<i32>} : memref<128x16xf32, #tpu.memory_space<vmem>>, vector<128x16xf32>,
    %c0_22 = arith.constant 0 : index
    %c0_23 = arith.constant 0 : index
    %31 = vector.load %arg10[%c0_22, %c0_23] : memref<128x16xf32, #tpu.memory_space<vmem>>, vector<128x16xf32>
    tpu.vector_store %arg10[%c0_22, %c0_23], %23 {strides = array<i32>} : memref<128x16xf32, #tpu.memory_space<vmem>>, vector<128x16xf32>,
    %c0_24 = arith.constant 0 : index
    %c0_25 = arith.constant 0 : index
    %32 = vector.load %arg11[%c0_24, %c0_25] : memref<128x16xf32, #tpu.memory_space<vmem>>, vector<128x16xf32>
    tpu.vector_store %arg11[%c0_24, %c0_25], %29 {strides = array<i32>} : memref<128x16xf32, #tpu.memory_space<vmem>>, vector<128x16xf32>,
    return
  }
  func.func @transform_0(%arg0: i32) -> (i32, i32) {
    %c0_i32 = arith.constant 0 : i32
    %c0_i32_0 = arith.constant 0 : i32
    return %arg0, %c0_i32 : i32, i32
  }
  func.func @transform_1(%arg0: i32) -> (i32, i32) {
    %c0_i32 = arith.constant 0 : i32
    %c0_i32_0 = arith.constant 0 : i32
    return %arg0, %c0_i32 : i32, i32
  }
  func.func @transform_2(%arg0: i32) -> (i32, i32) {
    %c0_i32 = arith.constant 0 : i32
    %c0_i32_0 = arith.constant 0 : i32
    %c0_i32_1 = arith.constant 0 : i32
    return %c0_i32, %c0_i32_0 : i32, i32
  }
  func.func @transform_3(%arg0: i32) -> (i32, i32) {
    %c0_i32 = arith.constant 0 : i32
    %c0_i32_0 = arith.constant 0 : i32
    %c0_i32_1 = arith.constant 0 : i32
    return %c0_i32, %c0_i32_0 : i32, i32
  }
  func.func @transform_4(%arg0: i32) -> (i32, i32) {
    %c0_i32 = arith.constant 0 : i32
    %c0_i32_0 = arith.constant 0 : i32
    %c0_i32_1 = arith.constant 0 : i32
    return %c0_i32, %c0_i32_0 : i32, i32
  }
  func.func @transform_5(%arg0: i32) -> (i32, i32) {
    %c0_i32 = arith.constant 0 : i32
    %c0_i32_0 = arith.constant 0 : i32
    %c0_i32_1 = arith.constant 0 : i32
    return %c0_i32, %c0_i32_0 : i32, i32
  }
  func.func @transform_6(%arg0: i32) -> (i32, i32) {
    %c0_i32 = arith.constant 0 : i32
    %c0_i32_0 = arith.constant 0 : i32
    %c0_i32_1 = arith.constant 0 : i32
    return %c0_i32, %c0_i32_0 : i32, i32
  }
  func.func @transform_7(%arg0: i32) -> (i32, i32) {
    %c0_i32 = arith.constant 0 : i32
    %c0_i32_0 = arith.constant 0 : i32
    %c0_i32_1 = arith.constant 0 : i32
    return %c0_i32, %c0_i32_0 : i32, i32
  }
  func.func @transform_8(%arg0: i32) -> (i32, i32) {
    %c0_i32 = arith.constant 0 : i32
    %c0_i32_0 = arith.constant 0 : i32
    return %arg0, %c0_i32 : i32, i32
  }
  func.func @transform_9(%arg0: i32) -> (i32, i32) {
    %c0_i32 = arith.constant 0 : i32
    %c0_i32_0 = arith.constant 0 : i32
    return %arg0, %c0_i32 : i32, i32
  }
  func.func @transform_10(%arg0: i32) -> (i32, i32) {
    %c0_i32 = arith.constant 0 : i32
    %c0_i32_0 = arith.constant 0 : i32
    return %arg0, %c0_i32 : i32, i32
  }
}

</mosaic_0001>

<llo_original>
// kernel: variational_encoder_forward.1
$region0: #{variational_encoder_forward.1}
  #allocation0 [shape = 'u32[]', space=smem, size = 0x4, offset = 0x4, fixed_abs, tag = 'smem constant byte address 0x4 - core index']
  #allocation1 [shape = 'u32[144,128]{1,0:T(1,128)}', space=vmem, size = 0x12000, scoped, tag = 'internal scratch']
  %s0 = inlined_call_operand.vmem [shape: bf16[128,16], index: 0, kind: input, shape index: {}]
  %s1 = inlined_call_operand.vmem [shape: f32[128,16], index: 1, kind: input, shape index: {}]
  %s2 = inlined_call_operand.vmem [shape: bf16[16,128], index: 2, kind: input, shape index: {}]
  %s3 = inlined_call_operand.vmem [shape: f32[1,128], index: 3, kind: input, shape index: {}]
  %s4 = inlined_call_operand.vmem [shape: bf16[128,128], index: 4, kind: input, shape index: {}]
  %s5 = inlined_call_operand.vmem [shape: f32[1,128], index: 5, kind: input, shape index: {}]
  %s6 = inlined_call_operand.vmem [shape: bf16[128,128], index: 6, kind: input, shape index: {}]
  %s7 = inlined_call_operand.vmem [shape: f32[1,128], index: 7, kind: input, shape index: {}]
  %s8 = inlined_call_operand.vmem [shape: f32[128,16], index: 8, kind: output, shape index: {0}]
  %s9 = inlined_call_operand.vmem [shape: f32[128,16], index: 9, kind: output, shape index: {1}]
  %s10 = inlined_call_operand.vmem [shape: f32[128,16], index: 10, kind: output, shape index: {2}]
  %11 = xla_tuple %s8, %s9, %s10
  %s12 = sld [smem:[#allocation0]]
  $region58: #{variational_encoder_forward.1} parent=0
    _
  %s14 = ssub.s32 1, %s12
  %s15 = scalar_select 0, %s14, %s12
  // Predicated region
  $region2: #{variational_encoder_forward.1} parent=0 // pred_check
    _
  $region3: #{variational_encoder_forward.1} parent=0 // pred_check_branch
    %17 = sbr.rel (0) target = $region5
  $region4: #{variational_encoder_forward.1} parent=0 // pred_region
    _
  $region5: #{variational_encoder_forward.1} parent=0 // pred_fallthru
    _
  // Predicated region
  $region6: #{variational_encoder_forward.1} parent=0 // pred_check
    _
  $region7: #{variational_encoder_forward.1} parent=0 // pred_check_branch
    %19 = sbr.rel (0) target = $region9
  $region8: #{variational_encoder_forward.1} parent=0 // pred_region
    _
  $region9: #{variational_encoder_forward.1} parent=0 // pred_fallthru
    _
  // Predicated region
  $region10: #{variational_encoder_forward.1} parent=0 // pred_check
    _
  $region11: #{variational_encoder_forward.1} parent=0 // pred_check_branch
    %21 = sbr.rel (0) target = $region13
  $region12: #{variational_encoder_forward.1} parent=0 // pred_region
    _
  $region13: #{variational_encoder_forward.1} parent=0 // pred_fallthru
    _
  // Predicated region
  $region14: #{variational_encoder_forward.1} parent=0 // pred_check
    _
  $region15: #{variational_encoder_forward.1} parent=0 // pred_check_branch
    %23 = sbr.rel (0) target = $region17
  $region16: #{variational_encoder_forward.1} parent=0 // pred_region
    _
  $region17: #{variational_encoder_forward.1} parent=0 // pred_fallthru
    _
  // Predicated region
  $region18: #{variational_encoder_forward.1} parent=0 // pred_check
    _
  $region19: #{variational_encoder_forward.1} parent=0 // pred_check_branch
    %25 = sbr.rel (0) target = $region21
  $region20: #{variational_encoder_forward.1} parent=0 // pred_region
    _
  $region21: #{variational_encoder_forward.1} parent=0 // pred_fallthru
    _
  // Predicated region
  $region22: #{variational_encoder_forward.1} parent=0 // pred_check
    _
  $region23: #{variational_encoder_forward.1} parent=0 // pred_check_branch
    %27 = sbr.rel (0) target = $region25
  $region24: #{variational_encoder_forward.1} parent=0 // pred_region
    _
  $region25: #{variational_encoder_forward.1} parent=0 // pred_fallthru
    _
  // Predicated region
  $region26: #{variational_encoder_forward.1} parent=0 // pred_check
    _
  $region27: #{variational_encoder_forward.1} parent=0 // pred_check_branch
    %29 = sbr.rel (0) target = $region29
  $region28: #{variational_encoder_forward.1} parent=0 // pred_region
    _
  $region29: #{variational_encoder_forward.1} parent=0 // pred_fallthru
    _
  // Predicated region
  $region30: #{variational_encoder_forward.1} parent=0 // pred_check
    _
  $region31: #{variational_encoder_forward.1} parent=0 // pred_check_branch
    %31 = sbr.rel (0) target = $region33
  $region32: #{variational_encoder_forward.1} parent=0 // pred_region
    _
  $region33: #{variational_encoder_forward.1} parent=0 // pred_fallthru
    _
  %v33 = vld [vmem:[%s0] sm:$0xf]
  %v34 = vld [vmem:[%s0 + $0x4] sm:$0xf]
  %v35 = vld [vmem:[%s0 + $0x8] sm:$0xf]
  %v36 = vld [vmem:[%s0 + $0xc] sm:$0xf]
  %v37 = vld [vmem:[%s0 + $0x10] sm:$0xf]
  %v38 = vld [vmem:[%s0 + $0x14] sm:$0xf]
  %v39 = vld [vmem:[%s0 + $0x18] sm:$0xf]
  %v40 = vld [vmem:[%s0 + $0x1c] sm:$0xf]
  %v41 = vld [vmem:[%s0 + $0x20] sm:$0xf]
  %v42 = vld [vmem:[%s0 + $0x24] sm:$0xf]
  %v43 = vld [vmem:[%s0 + $0x28] sm:$0xf]
  %v44 = vld [vmem:[%s0 + $0x2c] sm:$0xf]
  %v45 = vld [vmem:[%s0 + $0x30] sm:$0xf]
  %v46 = vld [vmem:[%s0 + $0x34] sm:$0xf]
  %v47 = vld [vmem:[%s0 + $0x38] sm:$0xf]
  %v48 = vld [vmem:[%s0 + $0x3c] sm:$0xf]
  %v49 = vld [vmem:[%s2] sm:$0xf]
  %v50 = vld [vmem:[%s2 + $0x4] sm:$0xf]
  %v51 = vld [vmem:[%s3] sm:$0x1]
  %v53 = vlaneseq
  %v54 = vshrl.u32 %v53, 7
  %v55 = vsub.s32 0, %v54
  %v56 = vrot.slane %v51, %v55
  %v74 = vunpack.c.l.b16 %v33
  %v75 = vunpack.c.l.b16 %v34
  %v76 = vunpack.c.l.b16 %v35
  %v77 = vunpack.c.l.b16 %v36
  %v78 = vunpack.c.l.b16 %v37
  %v79 = vunpack.c.l.b16 %v38
  %v80 = vunpack.c.l.b16 %v39
  %v81 = vunpack.c.l.b16 %v40
  %v82 = vunpack.c.l.b16 %v41
  %v83 = vunpack.c.l.b16 %v42
  %v84 = vunpack.c.l.b16 %v43
  %v85 = vunpack.c.l.b16 %v44
  %v86 = vunpack.c.l.b16 %v45
  %v87 = vunpack.c.l.b16 %v46
  %v88 = vunpack.c.l.b16 %v47
  %v89 = vunpack.c.l.b16 %v48
  %v90 = vpack.c.b16 %v75, %v74
  %v91 = vpack.c.b16 %v77, %v76
  %v92 = vpack.c.b16 %v79, %v78
  %v93 = vpack.c.b16 %v81, %v80
  %v94 = vpack.c.b16 %v83, %v82
  %v95 = vpack.c.b16 %v85, %v84
  %v96 = vpack.c.b16 %v87, %v86
  %v97 = vpack.c.b16 %v89, %v88
  %v100 = vunpack.c.l.b16 %v49
  %v101 = vunpack.c.l.b16 %v50
  %v102 = vpack.c.b16 %v101, %v100
  %vm104 = vcmask 130048
  %v106 = vsel %vm104, %v90, 0
  %v109 = vsel %vm104, %v91, 0
  %v112 = vsel %vm104, %v92, 0
  %v115 = vsel %vm104, %v93, 0
  %v118 = vsel %vm104, %v94, 0
  %v121 = vsel %vm104, %v95, 0
  %v124 = vsel %vm104, %v96, 0
  %v127 = vsel %vm104, %v97, 0
  %129 = vmatprep.subr.bf16.mxu0 0
  %130 = vmatpush1.bf16.msra.mxu0 %v102
  %131 = vmatprep.subr.bf16.mxu0 0
  %132 = vmatpush1.bf16.msra.mxu0 0
  %133 = vmatprep.subr.bf16.mxu0 0
  %134 = vmatpush1.bf16.msra.mxu0 0
  %135 = vmatprep.subr.bf16.mxu0 0
  %136 = vmatpush1.bf16.msra.mxu0 0
  %137 = vmatprep.subr.bf16.mxu0 0
  %138 = vmatpush1.bf16.msra.mxu0 0
  %139 = vmatprep.subr.bf16.mxu0 0
  %140 = vmatpush1.bf16.msra.mxu0 0
  %141 = vmatprep.subr.bf16.mxu0 0
  %142 = vmatpush1.bf16.msra.mxu0 0
  %143 = vmatprep.subr.bf16.mxu0 0
  %144 = vmatpush1.bf16.msra.mxu0 0
  %145 = vmatprep.subr.bf16.mxu0 0
  %146 = vmatpush1.bf16.msra.mxu0 0
  %147 = vmatprep.subr.bf16.mxu0 0
  %148 = vmatpush1.bf16.msra.mxu0 0
  %149 = vmatprep.subr.bf16.mxu0 0
  %150 = vmatpush1.bf16.msra.mxu0 0
  %151 = vmatprep.subr.bf16.mxu0 0
  %152 = vmatpush1.bf16.msra.mxu0 0
  %153 = vmatprep.subr.bf16.mxu0 0
  %154 = vmatpush1.bf16.msra.mxu0 0
  %155 = vmatprep.subr.bf16.mxu0 0
  %156 = vmatpush1.bf16.msra.mxu0 0
  %157 = vmatprep.subr.bf16.mxu0 0
  %158 = vmatpush1.bf16.msra.mxu0 0
  %159 = vmatprep.subr.bf16.mxu0 0
  %160 = vmatpush1.bf16.msra.mxu0 0
  %161 = vmatprep.mubr.bf16.mxu0 0
  %162 = vmatmul.mubr.bf16.gmra.mrb[0].mxu0 %v106
  %v163 = vpop.f32.mrb[0].mxu0
  %v164 = vadd.f32 %v56, %v163
  %v165 = vpop.f32.mrb[0].mxu0
  %v166 = vpop.f32.mrb[0].mxu0
  %v167 = vadd.f32 %v56, %v166
  %v168 = vpop.f32.mrb[0].mxu0
  %169 = vmatprep.mubr.bf16.mxu0 0
  %170 = vmatmul.mubr.bf16.gmra.mrb[0].mxu0 %v109
  %v171 = vpop.f32.mrb[0].mxu0
  %v172 = vadd.f32 %v56, %v171
  %v173 = vpop.f32.mrb[0].mxu0
  %v174 = vpop.f32.mrb[0].mxu0
  %v175 = vadd.f32 %v56, %v174
  %v176 = vpop.f32.mrb[0].mxu0
  %177 = vmatprep.mubr.bf16.mxu0 0
  %178 = vmatmul.mubr.bf16.gmra.mrb[0].mxu0 %v112
  %v179 = vpop.f32.mrb[0].mxu0
  %v180 = vadd.f32 %v56, %v179
  %v181 = vpop.f32.mrb[0].mxu0
  %v182 = vpop.f32.mrb[0].mxu0
  %v183 = vadd.f32 %v56, %v182
  %v184 = vpop.f32.mrb[0].mxu0
  %185 = vmatprep.mubr.bf16.mxu0 0
  %186 = vmatmul.mubr.bf16.gmra.mrb[0].mxu0 %v115
  %v187 = vpop.f32.mrb[0].mxu0
  %v188 = vadd.f32 %v56, %v187
  %v189 = vpop.f32.mrb[0].mxu0
  %v190 = vpop.f32.mrb[0].mxu0
  %v191 = vadd.f32 %v56, %v190
  %v192 = vpop.f32.mrb[0].mxu0
  %193 = vmatprep.mubr.bf16.mxu0 0
  %194 = vmatmul.mubr.bf16.gmra.mrb[0].mxu0 %v118
  %v195 = vpop.f32.mrb[0].mxu0
  %v196 = vadd.f32 %v56, %v195
  %v197 = vpop.f32.mrb[0].mxu0
  %v198 = vpop.f32.mrb[0].mxu0
  %v199 = vadd.f32 %v56, %v198
  %v200 = vpop.f32.mrb[0].mxu0
  %201 = vmatprep.mubr.bf16.mxu0 0
  %202 = vmatmul.mubr.bf16.gmra.mrb[0].mxu0 %v121
  %v203 = vpop.f32.mrb[0].mxu0
  %v204 = vadd.f32 %v56, %v203
  %v205 = vpop.f32.mrb[0].mxu0
  %v206 = vpop.f32.mrb[0].mxu0
  %v207 = vadd.f32 %v56, %v206
  %v208 = vpop.f32.mrb[0].mxu0
  %209 = vmatprep.mubr.bf16.mxu0 0
  %210 = vmatmul.mubr.bf16.gmra.mrb[0].mxu0 %v124
  %v211 = vpop.f32.mrb[0].mxu0
  %v212 = vadd.f32 %v56, %v211
  %v213 = vpop.f32.mrb[0].mxu0
  %v214 = vpop.f32.mrb[0].mxu0
  %v215 = vadd.f32 %v56, %v214
  %v216 = vpop.f32.mrb[0].mxu0
  %217 = vmatprep.mubr.bf16.mxu0 0
  %218 = vmatmul.mubr.bf16.gmra.mrb[0].mxu0 %v127
  %v219 = vpop.f32.mrb[0].mxu0
  %v220 = vadd.f32 %v56, %v219
  %v221 = vpop.f32.mrb[0].mxu0
  %v222 = vpop.f32.mrb[0].mxu0
  %v223 = vadd.f32 %v56, %v222
  %v224 = vpop.f32.mrb[0].mxu0
  %225 = vdwg.mxu0
  %v226 = vmax.f32 %v164, 0.0
  %v227 = vmax.f32 %v167, 0.0
  %v228 = vmax.f32 %v172, 0.0
  %v229 = vmax.f32 %v175, 0.0
  %v230 = vmax.f32 %v180, 0.0
  %v231 = vmax.f32 %v183, 0.0
  %v232 = vmax.f32 %v188, 0.0
  %v233 = vmax.f32 %v191, 0.0
  %v234 = vmax.f32 %v196, 0.0
  %v235 = vmax.f32 %v199, 0.0
  %v236 = vmax.f32 %v204, 0.0
  %v237 = vmax.f32 %v207, 0.0
  %v238 = vmax.f32 %v212, 0.0
  %v239 = vmax.f32 %v215, 0.0
  %v240 = vmax.f32 %v220, 0.0
  %v241 = vmax.f32 %v223, 0.0
  %v242 = vpack.c.bf16 %v227, %v226
  %v243 = vpack.c.bf16 %v229, %v228
  %v244 = vpack.c.bf16 %v231, %v230
  %v245 = vpack.c.bf16 %v233, %v232
  %v246 = vpack.c.bf16 %v235, %v234
  %v247 = vpack.c.bf16 %v237, %v236
  %v248 = vpack.c.bf16 %v239, %v238
  %v249 = vpack.c.bf16 %v241, %v240
  %v250 = vld [vmem:[%s4] sm:$0xf]
  %v251 = vld [vmem:[%s4 + $0x4] sm:$0xf]
  %v252 = vld [vmem:[%s4 + $0x8] sm:$0xf]
  %v253 = vld [vmem:[%s4 + $0xc] sm:$0xf]
  %v254 = vld [vmem:[%s4 + $0x10] sm:$0xf]
  %v255 = vld [vmem:[%s4 + $0x14] sm:$0xf]
  %v256 = vld [vmem:[%s4 + $0x18] sm:$0xf]
  %v257 = vld [vmem:[%s4 + $0x1c] sm:$0xf]
  %v258 = vld [vmem:[%s4 + $0x20] sm:$0xf]
  %v259 = vld [vmem:[%s4 + $0x24] sm:$0xf]
  %v260 = vld [vmem:[%s4 + $0x28] sm:$0xf]
  %v261 = vld [vmem:[%s4 + $0x2c] sm:$0xf]
  %v262 = vld [vmem:[%s4 + $0x30] sm:$0xf]
  %v263 = vld [vmem:[%s4 + $0x34] sm:$0xf]
  %v264 = vld [vmem:[%s4 + $0x38] sm:$0xf]
  %v265 = vld [vmem:[%s4 + $0x3c] sm:$0xf]
  %v266 = vld [vmem:[%s5] sm:$0x1]
  %v268 = vlaneseq
  %v269 = vshrl.u32 %v268, 7
  %v270 = vsub.s32 0, %v269
  %v271 = vrot.slane %v266, %v270
  %v289 = vunpack.c.l.b16 %v250
  %v290 = vunpack.c.l.b16 %v251
  %v291 = vunpack.c.l.b16 %v252
  %v292 = vunpack.c.l.b16 %v253
  %v293 = vunpack.c.l.b16 %v254
  %v294 = vunpack.c.l.b16 %v255
  %v295 = vunpack.c.l.b16 %v256
  %v296 = vunpack.c.l.b16 %v257
  %v297 = vunpack.c.l.b16 %v258
  %v298 = vunpack.c.l.b16 %v259
  %v299 = vunpack.c.l.b16 %v260
  %v300 = vunpack.c.l.b16 %v261
  %v301 = vunpack.c.l.b16 %v262
  %v302 = vunpack.c.l.b16 %v263
  %v303 = vunpack.c.l.b16 %v264
  %v304 = vunpack.c.l.b16 %v265
  %v305 = vpack.c.b16 %v290, %v289
  %v306 = vpack.c.b16 %v292, %v291
  %v307 = vpack.c.b16 %v294, %v293
  %v308 = vpack.c.b16 %v296, %v295
  %v309 = vpack.c.b16 %v298, %v297
  %v310 = vpack.c.b16 %v300, %v299
  %v311 = vpack.c.b16 %v302, %v301
  %v312 = vpack.c.b16 %v304, %v303
  %321 = vmatprep.subr.bf16.mxu0 0
  %322 = vmatpush1.bf16.msra.mxu0 %v305
  %323 = vmatprep.subr.bf16.mxu0 0
  %324 = vmatpush1.bf16.msra.mxu0 %v306
  %325 = vmatprep.subr.bf16.mxu0 0
  %326 = vmatpush1.bf16.msra.mxu0 %v307
  %327 = vmatprep.subr.bf16.mxu0 0
  %328 = vmatpush1.bf16.msra.mxu0 %v308
  %329 = vmatprep.subr.bf16.mxu0 0
  %330 = vmatpush1.bf16.msra.mxu0 %v309
  %331 = vmatprep.subr.bf16.mxu0 0
  %332 = vmatpush1.bf16.msra.mxu0 %v310
  %333 = vmatprep.subr.bf16.mxu0 0
  %334 = vmatpush1.bf16.msra.mxu0 %v311
  %335 = vmatprep.subr.bf16.mxu0 0
  %336 = vmatpush1.bf16.msra.mxu0 %v312
  %337 = vmatprep.subr.bf16.mxu0 0
  %338 = vmatpush1.bf16.msra.mxu0 0
  %339 = vmatprep.subr.bf16.mxu0 0
  %340 = vmatpush1.bf16.msra.mxu0 0
  %341 = vmatprep.subr.bf16.mxu0 0
  %342 = vmatpush1.bf16.msra.mxu0 0
  %343 = vmatprep.subr.bf16.mxu0 0
  %344 = vmatpush1.bf16.msra.mxu0 0
  %345 = vmatprep.subr.bf16.mxu0 0
  %346 = vmatpush1.bf16.msra.mxu0 0
  %347 = vmatprep.subr.bf16.mxu0 0
  %348 = vmatpush1.bf16.msra.mxu0 0
  %349 = vmatprep.subr.bf16.mxu0 0
  %350 = vmatpush1.bf16.msra.mxu0 0
  %351 = vmatprep.subr.bf16.mxu0 0
  %352 = vmatpush1.bf16.msra.mxu0 0
  %353 = vmatprep.mubr.bf16.mxu0 0
  %354 = vmatmul.mubr.bf16.gmra.mrb[0].mxu0 %v242
  %v355 = vpop.f32.mrb[0].mxu0
  %v356 = vadd.f32 %v271, %v355
  %v357 = vpop.f32.mrb[0].mxu0
  %v358 = vpop.f32.mrb[0].mxu0
  %v359 = vadd.f32 %v271, %v358
  %v360 = vpop.f32.mrb[0].mxu0
  %361 = vmatprep.mubr.bf16.mxu0 0
  %362 = vmatmul.mubr.bf16.gmra.mrb[0].mxu0 %v243
  %v363 = vpop.f32.mrb[0].mxu0
  %v364 = vadd.f32 %v271, %v363
  %v365 = vpop.f32.mrb[0].mxu0
  %v366 = vpop.f32.mrb[0].mxu0
  %v367 = vadd.f32 %v271, %v366
  %v368 = vpop.f32.mrb[0].mxu0
  %369 = vmatprep.mubr.bf16.mxu0 0
  %370 = vmatmul.mubr.bf16.gmra.mrb[0].mxu0 %v244
  %v371 = vpop.f32.mrb[0].mxu0
  %v372 = vadd.f32 %v271, %v371
  %v373 = vpop.f32.mrb[0].mxu0
  %v374 = vpop.f32.mrb[0].mxu0
  %v375 = vadd.f32 %v271, %v374
  %v376 = vpop.f32.mrb[0].mxu0
  %377 = vmatprep.mubr.bf16.mxu0 0
  %378 = vmatmul.mubr.bf16.gmra.mrb[0].mxu0 %v245
  %v379 = vpop.f32.mrb[0].mxu0
  %v380 = vadd.f32 %v271, %v379
  %v381 = vpop.f32.mrb[0].mxu0
  %v382 = vpop.f32.mrb[0].mxu0
  %v383 = vadd.f32 %v271, %v382
  %v384 = vpop.f32.mrb[0].mxu0
  %385 = vmatprep.mubr.bf16.mxu0 0
  %386 = vmatmul.mubr.bf16.gmra.mrb[0].mxu0 %v246
  %v387 = vpop.f32.mrb[0].mxu0
  %v388 = vadd.f32 %v271, %v387
  %v389 = vpop.f32.mrb[0].mxu0
  %v390 = vpop.f32.mrb[0].mxu0
  %v391 = vadd.f32 %v271, %v390
  %v392 = vpop.f32.mrb[0].mxu0
  %393 = vmatprep.mubr.bf16.mxu0 0
  %394 = vmatmul.mubr.bf16.gmra.mrb[0].mxu0 %v247
  %v395 = vpop.f32.mrb[0].mxu0
  %v396 = vadd.f32 %v271, %v395
  %v397 = vpop.f32.mrb[0].mxu0
  %v398 = vpop.f32.mrb[0].mxu0
  %v399 = vadd.f32 %v271, %v398
  %v400 = vpop.f32.mrb[0].mxu0
  %401 = vmatprep.mubr.bf16.mxu0 0
  %402 = vmatmul.mubr.bf16.gmra.mrb[0].mxu0 %v248
  %v403 = vpop.f32.mrb[0].mxu0
  %v404 = vadd.f32 %v271, %v403
  %v405 = vpop.f32.mrb[0].mxu0
  %v406 = vpop.f32.mrb[0].mxu0
  %v407 = vadd.f32 %v271, %v406
  %v408 = vpop.f32.mrb[0].mxu0
  %409 = vmatprep.mubr.bf16.mxu0 0
  %410 = vmatmul.mubr.bf16.gmra.mrb[0].mxu0 %v249
  %v411 = vpop.f32.mrb[0].mxu0
  %v412 = vadd.f32 %v271, %v411
  %v413 = vpop.f32.mrb[0].mxu0
  %v414 = vpop.f32.mrb[0].mxu0
  %v415 = vadd.f32 %v271, %v414
  %v416 = vpop.f32.mrb[0].mxu0
  %417 = vdwg.mxu0
  %v418 = vmax.f32 %v356, 0.0
  %v419 = vmax.f32 %v359, 0.0
  %v420 = vmax.f32 %v364, 0.0
  %v421 = vmax.f32 %v367, 0.0
  %v422 = vmax.f32 %v372, 0.0
  %v423 = vmax.f32 %v375, 0.0
  %v424 = vmax.f32 %v380, 0.0
  %v425 = vmax.f32 %v383, 0.0
  %v426 = vmax.f32 %v388, 0.0
  %v427 = vmax.f32 %v391, 0.0
  %v428 = vmax.f32 %v396, 0.0
  %v429 = vmax.f32 %v399, 0.0
  %v430 = vmax.f32 %v404, 0.0
  %v431 = vmax.f32 %v407, 0.0
  %v432 = vmax.f32 %v412, 0.0
  %v433 = vmax.f32 %v415, 0.0
  %v434 = vpack.c.bf16 %v419, %v418
  %v435 = vpack.c.bf16 %v421, %v420
  %v436 = vpack.c.bf16 %v423, %v422
  %v437 = vpack.c.bf16 %v425, %v424
  %v438 = vpack.c.bf16 %v427, %v426
  %v439 = vpack.c.bf16 %v429, %v428
  %v440 = vpack.c.bf16 %v431, %v430
  %v441 = vpack.c.bf16 %v433, %v432
  %v442 = vld [vmem:[%s6] sm:$0xf]
  %v443 = vld [vmem:[%s6 + $0x4] sm:$0xf]
  %v444 = vld [vmem:[%s6 + $0x8] sm:$0xf]
  %v445 = vld [vmem:[%s6 + $0xc] sm:$0xf]
  %v446 = vld [vmem:[%s6 + $0x10] sm:$0xf]
  %v447 = vld [vmem:[%s6 + $0x14] sm:$0xf]
  %v448 = vld [vmem:[%s6 + $0x18] sm:$0xf]
  %v449 = vld [vmem:[%s6 + $0x1c] sm:$0xf]
  %v450 = vld [vmem:[%s6 + $0x20] sm:$0xf]
  %v451 = vld [vmem:[%s6 + $0x24] sm:$0xf]
  %v452 = vld [vmem:[%s6 + $0x28] sm:$0xf]
  %v453 = vld [vmem:[%s6 + $0x2c] sm:$0xf]
  %v454 = vld [vmem:[%s6 + $0x30] sm:$0xf]
  %v455 = vld [vmem:[%s6 + $0x34] sm:$0xf]
  %v456 = vld [vmem:[%s6 + $0x38] sm:$0xf]
  %v457 = vld [vmem:[%s6 + $0x3c] sm:$0xf]
  %v458 = vld [vmem:[%s7] sm:$0x1]
  %v460 = vlaneseq
  %v461 = vshrl.u32 %v460, 7
  %v462 = vsub.s32 0, %v461
  %v463 = vrot.slane %v458, %v462
  %v481 = vunpack.c.l.b16 %v442
  %v482 = vunpack.c.l.b16 %v443
  %v483 = vunpack.c.l.b16 %v444
  %v484 = vunpack.c.l.b16 %v445
  %v485 = vunpack.c.l.b16 %v446
  %v486 = vunpack.c.l.b16 %v447
  %v487 = vunpack.c.l.b16 %v448
  %v488 = vunpack.c.l.b16 %v449
  %v489 = vunpack.c.l.b16 %v450
  %v490 = vunpack.c.l.b16 %v451
  %v491 = vunpack.c.l.b16 %v452
  %v492 = vunpack.c.l.b16 %v453
  %v493 = vunpack.c.l.b16 %v454
  %v494 = vunpack.c.l.b16 %v455
  %v495 = vunpack.c.l.b16 %v456
  %v496 = vunpack.c.l.b16 %v457
  %v497 = vpack.c.b16 %v482, %v481
  %v498 = vpack.c.b16 %v484, %v483
  %v499 = vpack.c.b16 %v486, %v485
  %v500 = vpack.c.b16 %v488, %v487
  %v501 = vpack.c.b16 %v490, %v489
  %v502 = vpack.c.b16 %v492, %v491
  %v503 = vpack.c.b16 %v494, %v493
  %v504 = vpack.c.b16 %v496, %v495
  %513 = vmatprep.subr.bf16.mxu0 0
  %514 = vmatpush1.bf16.msra.mxu0 %v497
  %515 = vmatprep.subr.bf16.mxu0 0
  %516 = vmatpush1.bf16.msra.mxu0 %v498
  %517 = vmatprep.subr.bf16.mxu0 0
  %518 = vmatpush1.bf16.msra.mxu0 %v499
  %519 = vmatprep.subr.bf16.mxu0 0
  %520 = vmatpush1.bf16.msra.mxu0 %v500
  %521 = vmatprep.subr.bf16.mxu0 0
  %522 = vmatpush1.bf16.msra.mxu0 %v501
  %523 = vmatprep.subr.bf16.mxu0 0
  %524 = vmatpush1.bf16.msra.mxu0 %v502
  %525 = vmatprep.subr.bf16.mxu0 0
  %526 = vmatpush1.bf16.msra.mxu0 %v503
  %527 = vmatprep.subr.bf16.mxu0 0
  %528 = vmatpush1.bf16.msra.mxu0 %v504
  %529 = vmatprep.subr.bf16.mxu0 0
  %530 = vmatpush1.bf16.msra.mxu0 0
  %531 = vmatprep.subr.bf16.mxu0 0
  %532 = vmatpush1.bf16.msra.mxu0 0
  %533 = vmatprep.subr.bf16.mxu0 0
  %534 = vmatpush1.bf16.msra.mxu0 0
  %535 = vmatprep.subr.bf16.mxu0 0
  %536 = vmatpush1.bf16.msra.mxu0 0
  %537 = vmatprep.subr.bf16.mxu0 0
  %538 = vmatpush1.bf16.msra.mxu0 0
  %539 = vmatprep.subr.bf16.mxu0 0
  %540 = vmatpush1.bf16.msra.mxu0 0
  %541 = vmatprep.subr.bf16.mxu0 0
  %542 = vmatpush1.bf16.msra.mxu0 0
  %543 = vmatprep.subr.bf16.mxu0 0
  %544 = vmatpush1.bf16.msra.mxu0 0
  %545 = vmatprep.mubr.bf16.mxu0 0
  %546 = vmatmul.mubr.bf16.gmra.mrb[0].mxu0 %v434
  %v547 = vpop.f32.mrb[0].mxu0
  %v548 = vadd.f32 %v463, %v547
  %v549 = vpop.f32.mrb[0].mxu0
  %v550 = vpop.f32.mrb[0].mxu0
  %v551 = vadd.f32 %v463, %v550
  %v552 = vpop.f32.mrb[0].mxu0
  %553 = vmatprep.mubr.bf16.mxu0 0
  %554 = vmatmul.mubr.bf16.gmra.mrb[0].mxu0 %v435
  %v555 = vpop.f32.mrb[0].mxu0
  %v556 = vadd.f32 %v463, %v555
  %v557 = vpop.f32.mrb[0].mxu0
  %v558 = vpop.f32.mrb[0].mxu0
  %v559 = vadd.f32 %v463, %v558
  %v560 = vpop.f32.mrb[0].mxu0
  %561 = vmatprep.mubr.bf16.mxu0 0
  %562 = vmatmul.mubr.bf16.gmra.mrb[0].mxu0 %v436
  %v563 = vpop.f32.mrb[0].mxu0
  %v564 = vadd.f32 %v463, %v563
  %v565 = vpop.f32.mrb[0].mxu0
  %v566 = vpop.f32.mrb[0].mxu0
  %v567 = vadd.f32 %v463, %v566
  %v568 = vpop.f32.mrb[0].mxu0
  %569 = vmatprep.mubr.bf16.mxu0 0
  %570 = vmatmul.mubr.bf16.gmra.mrb[0].mxu0 %v437
  %v571 = vpop.f32.mrb[0].mxu0
  %v572 = vadd.f32 %v463, %v571
  %v573 = vpop.f32.mrb[0].mxu0
  %v574 = vpop.f32.mrb[0].mxu0
  %v575 = vadd.f32 %v463, %v574
  %v576 = vpop.f32.mrb[0].mxu0
  %577 = vmatprep.mubr.bf16.mxu0 0
  %578 = vmatmul.mubr.bf16.gmra.mrb[0].mxu0 %v438
  %v579 = vpop.f32.mrb[0].mxu0
  %v580 = vadd.f32 %v463, %v579
  %v581 = vpop.f32.mrb[0].mxu0
  %v582 = vpop.f32.mrb[0].mxu0
  %v583 = vadd.f32 %v463, %v582
  %v584 = vpop.f32.mrb[0].mxu0
  %585 = vmatprep.mubr.bf16.mxu0 0
  %586 = vmatmul.mubr.bf16.gmra.mrb[0].mxu0 %v439
  %v587 = vpop.f32.mrb[0].mxu0
  %v588 = vadd.f32 %v463, %v587
  %v589 = vpop.f32.mrb[0].mxu0
  %v590 = vpop.f32.mrb[0].mxu0
  %v591 = vadd.f32 %v463, %v590
  %v592 = vpop.f32.mrb[0].mxu0
  %593 = vmatprep.mubr.bf16.mxu0 0
  %594 = vmatmul.mubr.bf16.gmra.mrb[0].mxu0 %v440
  %v595 = vpop.f32.mrb[0].mxu0
  %v596 = vadd.f32 %v463, %v595
  %v597 = vpop.f32.mrb[0].mxu0
  %v598 = vpop.f32.mrb[0].mxu0
  %v599 = vadd.f32 %v463, %v598
  %v600 = vpop.f32.mrb[0].mxu0
  %601 = vmatprep.mubr.bf16.mxu0 0
  %602 = vmatmul.mubr.bf16.gmra.mrb[0].mxu0 %v441
  %v603 = vpop.f32.mrb[0].mxu0
  %v604 = vadd.f32 %v463, %v603
  %v605 = vpop.f32.mrb[0].mxu0
  %v606 = vpop.f32.mrb[0].mxu0
  %v607 = vadd.f32 %v463, %v606
  %v608 = vpop.f32.mrb[0].mxu0
  %609 = vdwg.mxu0
  %v610 = vmul.f32 %v548, 0.5
  %v611 = vmul.f32 %v551, 0.5
  %v612 = vmul.f32 %v556, 0.5
  %v613 = vmul.f32 %v559, 0.5
  %v614 = vmul.f32 %v564, 0.5
  %v615 = vmul.f32 %v567, 0.5
  %v616 = vmul.f32 %v572, 0.5
  %v617 = vmul.f32 %v575, 0.5
  %v618 = vmul.f32 %v580, 0.5
  %v619 = vmul.f32 %v583, 0.5
  %v620 = vmul.f32 %v588, 0.5
  %v621 = vmul.f32 %v591, 0.5
  %v622 = vmul.f32 %v596, 0.5
  %v623 = vmul.f32 %v599, 0.5
  %v624 = vmul.f32 %v604, 0.5
  %v625 = vmul.f32 %v607, 0.5
  %v626 = vmul.f32 %v610, 1.442695
  %v627 = vpow.pop %v626
  %v628 = vmul.f32 %v611, 1.442695
  %v629 = vpow.pop %v628
  %v630 = vmul.f32 %v612, 1.442695
  %v631 = vpow.pop %v630
  %v632 = vmul.f32 %v613, 1.442695
  %v633 = vpow.pop %v632
  %v634 = vmul.f32 %v614, 1.442695
  %v635 = vpow.pop %v634
  %v636 = vmul.f32 %v615, 1.442695
  %v637 = vpow.pop %v636
  %v638 = vmul.f32 %v616, 1.442695
  %v639 = vpow.pop %v638
  %v640 = vmul.f32 %v617, 1.442695
  %v641 = vpow.pop %v640
  %v642 = vmul.f32 %v618, 1.442695
  %v643 = vpow.pop %v642
  %v644 = vmul.f32 %v619, 1.442695
  %v645 = vpow.pop %v644
  %v646 = vmul.f32 %v620, 1.442695
  %v647 = vpow.pop %v646
  %v648 = vmul.f32 %v621, 1.442695
  %v649 = vpow.pop %v648
  %v650 = vmul.f32 %v622, 1.442695
  %v651 = vpow.pop %v650
  %v652 = vmul.f32 %v623, 1.442695
  %v653 = vpow.pop %v652
  %v654 = vmul.f32 %v624, 1.442695
  %v655 = vpow.pop %v654
  %v656 = vmul.f32 %v625, 1.442695
  %v657 = vpow.pop %v656
  %v658 = vld [vmem:[%s1] sm:$0xff]
  %v659 = vld [vmem:[%s1 + $0x8] sm:$0xff]
  %v660 = vld [vmem:[%s1 + $0x10] sm:$0xff]
  %v661 = vld [vmem:[%s1 + $0x18] sm:$0xff]
  %v662 = vld [vmem:[%s1 + $0x20] sm:$0xff]
  %v663 = vld [vmem:[%s1 + $0x28] sm:$0xff]
  %v664 = vld [vmem:[%s1 + $0x30] sm:$0xff]
  %v665 = vld [vmem:[%s1 + $0x38] sm:$0xff]
  %v666 = vld [vmem:[%s1 + $0x40] sm:$0xff]
  %v667 = vld [vmem:[%s1 + $0x48] sm:$0xff]
  %v668 = vld [vmem:[%s1 + $0x50] sm:$0xff]
  %v669 = vld [vmem:[%s1 + $0x58] sm:$0xff]
  %v670 = vld [vmem:[%s1 + $0x60] sm:$0xff]
  %v671 = vld [vmem:[%s1 + $0x68] sm:$0xff]
  %v672 = vld [vmem:[%s1 + $0x70] sm:$0xff]
  %v673 = vld [vmem:[%s1 + $0x78] sm:$0xff]
  %690 = vrot.lane.b32.xlu0 %v627, 112
  %v691 = vpop.permute.xlu0 %690
  %692 = vrot.lane.b32.xlu0 %v629, 112
  %v693 = vpop.permute.xlu0 %692
  %694 = vrot.lane.b32.xlu0 %v631, 112
  %v695 = vpop.permute.xlu0 %694
  %696 = vrot.lane.b32.xlu0 %v633, 112
  %v697 = vpop.permute.xlu0 %696
  %698 = vrot.lane.b32.xlu0 %v635, 112
  %v699 = vpop.permute.xlu0 %698
  %700 = vrot.lane.b32.xlu0 %v637, 112
  %v701 = vpop.permute.xlu0 %700
  %702 = vrot.lane.b32.xlu0 %v639, 112
  %v703 = vpop.permute.xlu0 %702
  %704 = vrot.lane.b32.xlu0 %v641, 112
  %v705 = vpop.permute.xlu0 %704
  %706 = vrot.lane.b32.xlu0 %v643, 112
  %v707 = vpop.permute.xlu0 %706
  %708 = vrot.lane.b32.xlu0 %v645, 112
  %v709 = vpop.permute.xlu0 %708
  %710 = vrot.lane.b32.xlu0 %v647, 112
  %v711 = vpop.permute.xlu0 %710
  %712 = vrot.lane.b32.xlu0 %v649, 112
  %v713 = vpop.permute.xlu0 %712
  %714 = vrot.lane.b32.xlu0 %v651, 112
  %v715 = vpop.permute.xlu0 %714
  %716 = vrot.lane.b32.xlu0 %v653, 112
  %v717 = vpop.permute.xlu0 %716
  %718 = vrot.lane.b32.xlu0 %v655, 112
  %v719 = vpop.permute.xlu0 %718
  %720 = vrot.lane.b32.xlu0 %v657, 112
  %v721 = vpop.permute.xlu0 %720
  %v738 = vmul.f32 %v658, %v691
  %v739 = vmul.f32 %v659, %v693
  %v740 = vmul.f32 %v660, %v695
  %v741 = vmul.f32 %v661, %v697
  %v742 = vmul.f32 %v662, %v699
  %v743 = vmul.f32 %v663, %v701
  %v744 = vmul.f32 %v664, %v703
  %v745 = vmul.f32 %v665, %v705
  %v746 = vmul.f32 %v666, %v707
  %v747 = vmul.f32 %v667, %v709
  %v748 = vmul.f32 %v668, %v711
  %v749 = vmul.f32 %v669, %v713
  %v750 = vmul.f32 %v670, %v715
  %v751 = vmul.f32 %v671, %v717
  %v752 = vmul.f32 %v672, %v719
  %v753 = vmul.f32 %v673, %v721
  %v754 = vadd.f32 %v548, %v738
  %v755 = vadd.f32 %v551, %v739
  %v756 = vadd.f32 %v556, %v740
  %v757 = vadd.f32 %v559, %v741
  %v758 = vadd.f32 %v564, %v742
  %v759 = vadd.f32 %v567, %v743
  %v760 = vadd.f32 %v572, %v744
  %v761 = vadd.f32 %v575, %v745
  %v762 = vadd.f32 %v580, %v746
  %v763 = vadd.f32 %v583, %v747
  %v764 = vadd.f32 %v588, %v748
  %v765 = vadd.f32 %v591, %v749
  %v766 = vadd.f32 %v596, %v750
  %v767 = vadd.f32 %v599, %v751
  %v768 = vadd.f32 %v604, %v752
  %v769 = vadd.f32 %v607, %v753
  %770 = vst.msk [vmem:[%s8] sm:$0xff] %vm104, %v548
  %771 = vst.msk [vmem:[%s8 + $0x8] sm:$0xff] %vm104, %v551
  %772 = vst.msk [vmem:[%s8 + $0x10] sm:$0xff] %vm104, %v556
  %773 = vst.msk [vmem:[%s8 + $0x18] sm:$0xff] %vm104, %v559
  %774 = vst.msk [vmem:[%s8 + $0x20] sm:$0xff] %vm104, %v564
  %775 = vst.msk [vmem:[%s8 + $0x28] sm:$0xff] %vm104, %v567
  %776 = vst.msk [vmem:[%s8 + $0x30] sm:$0xff] %vm104, %v572
  %777 = vst.msk [vmem:[%s8 + $0x38] sm:$0xff] %vm104, %v575
  %778 = vst.msk [vmem:[%s8 + $0x40] sm:$0xff] %vm104, %v580
  %779 = vst.msk [vmem:[%s8 + $0x48] sm:$0xff] %vm104, %v583
  %780 = vst.msk [vmem:[%s8 + $0x50] sm:$0xff] %vm104, %v588
  %781 = vst.msk [vmem:[%s8 + $0x58] sm:$0xff] %vm104, %v591
  %782 = vst.msk [vmem:[%s8 + $0x60] sm:$0xff] %vm104, %v596
  %783 = vst.msk [vmem:[%s8 + $0x68] sm:$0xff] %vm104, %v599
  %784 = vst.msk [vmem:[%s8 + $0x70] sm:$0xff] %vm104, %v604
  %785 = vst.msk [vmem:[%s8 + $0x78] sm:$0xff] %vm104, %v607
  %802 = vrot.lane.b32.xlu0 %v548, 112
  %v803 = vpop.permute.xlu0 %802
  %804 = vrot.lane.b32.xlu0 %v551, 112
  %v805 = vpop.permute.xlu0 %804
  %806 = vrot.lane.b32.xlu0 %v556, 112
  %v807 = vpop.permute.xlu0 %806
  %808 = vrot.lane.b32.xlu0 %v559, 112
  %v809 = vpop.permute.xlu0 %808
  %810 = vrot.lane.b32.xlu0 %v564, 112
  %v811 = vpop.permute.xlu0 %810
  %812 = vrot.lane.b32.xlu0 %v567, 112
  %v813 = vpop.permute.xlu0 %812
  %814 = vrot.lane.b32.xlu0 %v572, 112
  %v815 = vpop.permute.xlu0 %814
  %816 = vrot.lane.b32.xlu0 %v575, 112
  %v817 = vpop.permute.xlu0 %816
  %818 = vrot.lane.b32.xlu0 %v580, 112
  %v819 = vpop.permute.xlu0 %818
  %820 = vrot.lane.b32.xlu0 %v583, 112
  %v821 = vpop.permute.xlu0 %820
  %822 = vrot.lane.b32.xlu0 %v588, 112
  %v823 = vpop.permute.xlu0 %822
  %824 = vrot.lane.b32.xlu0 %v591, 112
  %v825 = vpop.permute.xlu0 %824
  %826 = vrot.lane.b32.xlu0 %v596, 112
  %v827 = vpop.permute.xlu0 %826
  %828 = vrot.lane.b32.xlu0 %v599, 112
  %v829 = vpop.permute.xlu0 %828
  %830 = vrot.lane.b32.xlu0 %v604, 112
  %v831 = vpop.permute.xlu0 %830
  %832 = vrot.lane.b32.xlu0 %v607, 112
  %v833 = vpop.permute.xlu0 %832
  %850 = vst.msk [vmem:[%s9] sm:$0xff] %vm104, %v803
  %851 = vst.msk [vmem:[%s9 + $0x8] sm:$0xff] %vm104, %v805
  %852 = vst.msk [vmem:[%s9 + $0x10] sm:$0xff] %vm104, %v807
  %853 = vst.msk [vmem:[%s9 + $0x18] sm:$0xff] %vm104, %v809
  %854 = vst.msk [vmem:[%s9 + $0x20] sm:$0xff] %vm104, %v811
  %855 = vst.msk [vmem:[%s9 + $0x28] sm:$0xff] %vm104, %v813
  %856 = vst.msk [vmem:[%s9 + $0x30] sm:$0xff] %vm104, %v815
  %857 = vst.msk [vmem:[%s9 + $0x38] sm:$0xff] %vm104, %v817
  %858 = vst.msk [vmem:[%s9 + $0x40] sm:$0xff] %vm104, %v819
  %859 = vst.msk [vmem:[%s9 + $0x48] sm:$0xff] %vm104, %v821
  %860 = vst.msk [vmem:[%s9 + $0x50] sm:$0xff] %vm104, %v823
  %861 = vst.msk [vmem:[%s9 + $0x58] sm:$0xff] %vm104, %v825
  %862 = vst.msk [vmem:[%s9 + $0x60] sm:$0xff] %vm104, %v827
  %863 = vst.msk [vmem:[%s9 + $0x68] sm:$0xff] %vm104, %v829
  %864 = vst.msk [vmem:[%s9 + $0x70] sm:$0xff] %vm104, %v831
  %865 = vst.msk [vmem:[%s9 + $0x78] sm:$0xff] %vm104, %v833
  %866 = vst.msk [vmem:[%s10] sm:$0xff] %vm104, %v754
  %867 = vst.msk [vmem:[%s10 + $0x8] sm:$0xff] %vm104, %v755
  %868 = vst.msk [vmem:[%s10 + $0x10] sm:$0xff] %vm104, %v756
  %869 = vst.msk [vmem:[%s10 + $0x18] sm:$0xff] %vm104, %v757
  %870 = vst.msk [vmem:[%s10 + $0x20] sm:$0xff] %vm104, %v758
  %871 = vst.msk [vmem:[%s10 + $0x28] sm:$0xff] %vm104, %v759
  %872 = vst.msk [vmem:[%s10 + $0x30] sm:$0xff] %vm104, %v760
  %873 = vst.msk [vmem:[%s10 + $0x38] sm:$0xff] %vm104, %v761
  %874 = vst.msk [vmem:[%s10 + $0x40] sm:$0xff] %vm104, %v762
  %875 = vst.msk [vmem:[%s10 + $0x48] sm:$0xff] %vm104, %v763
  %876 = vst.msk [vmem:[%s10 + $0x50] sm:$0xff] %vm104, %v764
  %877 = vst.msk [vmem:[%s10 + $0x58] sm:$0xff] %vm104, %v765
  %878 = vst.msk [vmem:[%s10 + $0x60] sm:$0xff] %vm104, %v766
  %879 = vst.msk [vmem:[%s10 + $0x68] sm:$0xff] %vm104, %v767
  %880 = vst.msk [vmem:[%s10 + $0x70] sm:$0xff] %vm104, %v768
  %881 = vst.msk [vmem:[%s10 + $0x78] sm:$0xff] %vm104, %v769
  // Predicated region
  $region34: #{variational_encoder_forward.1} parent=0 // pred_check
    _
  $region35: #{variational_encoder_forward.1} parent=0 // pred_check_branch
    %883 = sbr.rel (0) target = $region37
  $region36: #{variational_encoder_forward.1} parent=0 // pred_region
    _
  $region37: #{variational_encoder_forward.1} parent=0 // pred_fallthru
    _
  // Predicated region
  $region38: #{variational_encoder_forward.1} parent=0 // pred_check
    _
  $region39: #{variational_encoder_forward.1} parent=0 // pred_check_branch
    %885 = sbr.rel (0) target = $region41
  $region40: #{variational_encoder_forward.1} parent=0 // pred_region
    _
  $region41: #{variational_encoder_forward.1} parent=0 // pred_fallthru
    _
  // Predicated region
  $region42: #{variational_encoder_forward.1} parent=0 // pred_check
    _
  $region43: #{variational_encoder_forward.1} parent=0 // pred_check_branch
    %887 = sbr.rel (0) target = $region45
  $region44: #{variational_encoder_forward.1} parent=0 // pred_region
    _
  $region45: #{variational_encoder_forward.1} parent=0 // pred_fallthru
    _
  // Predicated region
  $region46: #{variational_encoder_forward.1} parent=0 // pred_check
    _
  $region47: #{variational_encoder_forward.1} parent=0 // pred_check_branch
    %889 = sbr.rel (0) target = $region49
  $region48: #{variational_encoder_forward.1} parent=0 // pred_region
    _
  $region49: #{variational_encoder_forward.1} parent=0 // pred_fallthru
    _
  // Predicated region
  $region50: #{variational_encoder_forward.1} parent=0 // pred_check
    _
  $region51: #{variational_encoder_forward.1} parent=0 // pred_check_branch
    %891 = sbr.rel (0) target = $region53
  $region52: #{variational_encoder_forward.1} parent=0 // pred_region
    _
  $region53: #{variational_encoder_forward.1} parent=0 // pred_fallthru
    _
  // Predicated region
  $region54: #{variational_encoder_forward.1} parent=0 // pred_check
    _
  $region55: #{variational_encoder_forward.1} parent=0 // pred_check_branch
    %893 = sbr.rel (0) target = $region57
  $region56: #{variational_encoder_forward.1} parent=0 // pred_region
    _
  $region57: #{variational_encoder_forward.1} parent=0 // pred_fallthru
    _

</llo_original>
